<compile_context>
chip_gen: v5e
topology: v5e:2x2
jax: 0.10.0
libtpu: 0.0.40
codegen_flags: <defaults>
</compile_context>

<pallas_src>
import numpy as np
import jax
import jax.numpy as jnp
from jax.experimental import pallas as pl
from jax.experimental.pallas import tpu as pltpu  # noqa: F401  (TPU backend)

# ---- small synthetic config (consistent with the module's constraints) ----
B = 2            # batch_size
H = 32           # hidden_size
E = 32           # embed_size   (must equal hidden_size: w_y(com_embed))
L = 16           # max_code_len
N = 8            # max_node_num
V = 64           # com_vocab_size
GAT = 2 * H      # gat_input_size (must equal 2*hidden_size: W_ga(g_reshape))
H2 = 2 * H
VPAD = 128       # lane-dense output / slab width (>= V)

# ---- row offsets inside the packed weight slab (WSLAB_ROWS, 128) ----
R_WIH = 0                 # GRU input weights  (E=32 rows, 96 lanes, gates r|z|n)
R_WHH = R_WIH + E         # 32: GRU hidden weights (H rows, 96 lanes)
R_WLAT = R_WHH + H        # 64: W_la^T (H rows, 64 lanes)
R_WOUT = R_WLAT + H       # 96: fc_out weight (L rows, padded to 128 lanes)
R_BFC = R_WOUT + L        # 112: fc bias (32 lanes)
R_BIH = R_BFC + 1         # 113: GRU input bias (96 lanes)
R_BHH = R_BIH + 1         # 114: GRU hidden bias (96 lanes)
R_WH = R_BHH + 1          # 115: w_h (32 lanes)
R_WC = R_WH + 1           # 116: w_c (64 lanes)
R_WY = R_WC + 1           # 117: w_y (32 lanes)
R_BOUT = R_WY + 1         # 118: fc_out bias padded to 128
WSLAB_ROWS = 120          # padded to a multiple of 8


def decoder_kernel(head_ref, qt_ref, wfc_ref, w_ref, out_ref):
    f32 = jnp.float32

    # ---- unpack per-step activations (static slices) ----
    cat_qg = head_ref[:, 0:1, :].reshape(B, 2 * H2)        # (B,128) = [qn_t | g_t]
    x = head_ref[:, 1:2, :E].reshape(B, E)                 # (B,32) embedded token
    qt = qt_ref[...]                                        # (B,L,2H) node-0 code states

    # ---- de_init_state = fc(cat(qn_t, g_t)): ONE 128-lane matmul ----
    h0 = (jnp.dot(cat_qg, wfc_ref[...], preferred_element_type=f32)
          + w_ref[R_BFC:R_BFC + 1, :H])                    # (B,H)

    # ---- single-step GRU: two fused matmuls, gate order r|z|n along lanes ----
    gi = (jnp.dot(x, w_ref[R_WIH:R_WIH + E, :3 * H], preferred_element_type=f32)
          + w_ref[R_BIH:R_BIH + 1, :3 * H])                # (B,96)
    gh = (jnp.dot(h0, w_ref[R_WHH:R_WHH + H, :3 * H], preferred_element_type=f32)
          + w_ref[R_BHH:R_BHH + 1, :3 * H])                # (B,96)
    r = jax.nn.sigmoid(gi[:, 0:H] + gh[:, 0:H])
    z = jax.nn.sigmoid(gi[:, H:2 * H] + gh[:, H:2 * H])
    n = jnp.tanh(gi[:, 2 * H:3 * H] + r * gh[:, 2 * H:3 * H])
    out = (1.0 - z) * n + z * h0                           # (B,H)

    # ---- local attention: contract `out` with W_la^T first (no q_t projection) ----
    proj = jnp.dot(out, w_ref[R_WLAT:R_WLAT + H, :H2],
                   preferred_element_type=f32)             # (B,2H)
    sl = jnp.sum(proj[:, None, :] * qt, axis=-1)           # (B,L)
    m = jnp.max(sl, axis=-1, keepdims=True)
    e = jnp.exp(sl - m)
    beta = e / jnp.sum(e, axis=-1, keepdims=True)          # exact softmax
    c = jnp.sum(beta[:, :, None] * qt, axis=1)             # (B,2H)

    # ---- pointer gate: LeakyReLU(0.2)(w_h(out) + w_c(c) + w_y(com_embed)) ----
    p_pre = (jnp.sum(out * w_ref[R_WH:R_WH + 1, :H], axis=-1, keepdims=True)
             + jnp.sum(c * w_ref[R_WC:R_WC + 1, :H2], axis=-1, keepdims=True)
             + jnp.sum(x * w_ref[R_WY:R_WY + 1, :E], axis=-1, keepdims=True))
    p_gen = jnp.where(p_pre > 0, p_pre, 0.2 * p_pre)       # (B,1)

    # P_vocab = softmax over the length-1 decode axis == 1.0 exactly, so the
    # W_v / graph-attention branch cancels:  P_w = p_gen + beta * (1 - p_gen).
    p_w = p_gen + beta * (1.0 - p_gen)                     # (B,L)

    # ---- output projection (lane-dense 128-wide) ----
    pre = (jnp.dot(p_w, w_ref[R_WOUT:R_WOUT + L, :], preferred_element_type=f32)
           + w_ref[R_BOUT:R_BOUT + 1, :])                  # (B,128)
    out_ref[...] = pre


# ------------------------- parameter init -------------------------

def init_params(key):
    ks = jax.random.split(key, 16)

    def w(k, shape, scale=0.1):
        return (scale * jax.random.normal(k, shape)).astype(jnp.float32)

    return dict(
        embed=w(ks[0], (V, E)),
        wfc=w(ks[1], (2 * GAT, H)), bfc=w(ks[2], (1, H)),
        wih=w(ks[3], (E, 3 * H)), whh=w(ks[4], (H, 3 * H)),
        bih=w(ks[5], (1, 3 * H)), bhh=w(ks[6], (1, 3 * H)),
        wga=w(ks[7], (GAT, H)), wla=w(ks[8], (GAT, H)),
        wv=w(ks[9], (5 * H, L)), bv=w(ks[10], (1, L)),       # dead branch (reference only)
        wh=w(ks[11], (1, H)), wc=w(ks[12], (1, 2 * H)), wy=w(ks[13], (1, E)),
        wfo=w(ks[14], (L, V)), bfo=w(ks[15], (1, V)),
    )


# ------------------------- one-time weight packing -------------------------

def pack_weights(params):
    """Pack weights ONCE (hoisted out of the per-step forward)."""
    def row(a, width=VPAD):
        a = jnp.asarray(a, jnp.float32)
        return jnp.pad(a, ((0, 0), (0, width - a.shape[1])))

    wfc_p = jnp.asarray(params['wfc'], jnp.float32)         # (128, 32)

    blocks = [
        row(params['wih']),            # rows [0:32]    lanes 0:96
        row(params['whh']),            # rows [32:64]   lanes 0:96
        row(params['wla'].T),          # rows [64:96]   lanes 0:64  (W_la^T)
        row(params['wfo']),            # rows [96:112]  lanes 0:64 (padded to 128)
        row(params['bfc']),            # row 112
        row(params['bih']),            # row 113
        row(params['bhh']),            # row 114
        row(params['wh']),             # row 115
        row(params['wc']),             # row 116
        row(params['wy']),             # row 117
        row(params['bfo']),            # row 118
    ]
    wslab = jnp.concatenate(blocks, axis=0)
    wslab = jnp.pad(wslab, ((0, WSLAB_ROWS - wslab.shape[0]), (0, 0)))
    assert wslab.shape == (WSLAB_ROWS, VPAD)
    return wfc_p, wslab


# ------------------------- per-step forward -------------------------

def _pack_data(embed, y, q, q_n, g):
    qn_t = q_n.reshape(-1, N, H2)[:, 0, :]                  # (B, 2H)
    g_t = g.reshape(-1, N, H2)[:, 0, :]                     # (B, 2H)
    q_t = q.reshape(-1, N, L, H2)[:, 0, :, :]               # (B, L, 2H)
    x = embed[y]                                            # (B, E) embedding gather
    row0 = jnp.concatenate([qn_t, g_t], axis=1)             # (B, 128)
    row1 = jnp.pad(x, ((0, 0), (0, 2 * H2 - E)))            # (B, 128)
    head = jnp.stack([row0, row1], axis=1)                  # (B, 2, 128)
    return head.astype(jnp.float32), q_t.astype(jnp.float32)


@jax.jit
def decoder_forward(embed, wfc_p, wslab, y, q, q_n, g):
    head, q_t = _pack_data(embed, y, q, q_n, g)
    out = pl.pallas_call(
        decoder_kernel,
        out_shape=jax.ShapeDtypeStruct((B, VPAD), jnp.float32),
    )(head, q_t, wfc_p, wslab)
    return out[:, :V]                                       # (B, V), matches `.squeeze(1)`


# ------------------------- pure-JAX reference (full module) -------------------------

def decoder_ref(params, y, q, q_n, g):
    """Mirrors the PyTorch forward exactly, including the (degenerate) W_v branch."""
    g_reshape = g.reshape(-1, N, 2 * H)
    qn_t = q_n.reshape(-1, N, 2 * H)[:, 0, :]
    g_t = g_reshape[:, 0, :]
    q_t = q.reshape(-1, N, L, 2 * H)[:, 0, :, :]
    com_embed = params['embed'][y][:, None, :]              # (B, 1, E)
    x = com_embed[:, 0, :]

    h0 = jnp.concatenate([qn_t, g_t], axis=1) @ params['wfc'] + params['bfc']
    gi = x @ params['wih'] + params['bih']
    gh = h0 @ params['whh'] + params['bhh']
    r = jax.nn.sigmoid(gi[:, :H] + gh[:, :H])
    z = jax.nn.sigmoid(gi[:, H:2 * H] + gh[:, H:2 * H])
    n = jnp.tanh(gi[:, 2 * H:] + r * gh[:, 2 * H:])
    out = (1 - z) * n + z * h0
    out3 = out[:, None, :]

    g_proj = g_reshape @ params['wga']
    gamma = jax.nn.softmax(jnp.einsum('bqh,bnh->bqn', out3, g_proj), axis=-1)
    cg = jnp.einsum('bqn,bnf->bqf', gamma, g_reshape)
    q_proj = q_t @ params['wla']
    beta = jax.nn.softmax(jnp.einsum('bqh,blh->bql', out3, q_proj), axis=-1)
    c = jnp.einsum('bql,blf->bqf', beta, q_t)

    concat = jnp.concatenate([out3, c, cg], axis=2)
    p_vocab = jax.nn.softmax(concat @ params['wv'] + params['bv'], axis=1)
    p_gen = (out3 @ params['wh'].T + c @ params['wc'].T
             + com_embed @ params['wy'].T)[..., 0]          # (B, 1)
    p_gen = jnp.where(p_gen > 0, p_gen, 0.2 * p_gen)
    p_w = p_vocab * p_gen[:, :, None] + beta * (1 - p_gen)[:, :, None]
    return (p_w @ params['wfo'] + params['bfo'])[:, 0, :]


if __name__ == "__main__":
    key = jax.random.PRNGKey(0)
    kp, ky, kq, kqn, kg = jax.random.split(key, 5)
    params = init_params(kp)

    # Weights are packed once, outside the per-step forward.
    wfc_p, wslab = pack_weights(params)

    y = jax.random.randint(ky, (B,), 0, V, dtype=jnp.int32)
    q = jax.random.normal(kq, (B, N, L, 2 * H), dtype=jnp.float32)
    q_n = jax.random.normal(kqn, (B, N, 2 * H), dtype=jnp.float32)
    g = jax.random.normal(kg, (B, N, 2 * H), dtype=jnp.float32)

    pre = jax.block_until_ready(
        decoder_forward(params['embed'], wfc_p, wslab, y, q, q_n, g))
    ref = decoder_ref(params, y, q, q_n, g)

    assert pre.shape == (B, V), pre.shape
    np.testing.assert_allclose(np.asarray(pre), np.asarray(ref),
                               rtol=1e-2, atol=1e-2)
    print("KERNEL_OK")
</pallas_src>

<mosaic_0001>
module attributes {stable_mosaic.version = 11 : i64} {
  func.func @decoder_kernel(%arg0: memref<2x2x128xf32, #tpu.memory_space<vmem>>, %arg1: memref<2x16x64xf32, #tpu.memory_space<vmem>>, %arg2: memref<128x32xf32, #tpu.memory_space<vmem>>, %arg3: memref<120x128xf32, #tpu.memory_space<vmem>>, %arg4: memref<2x128xf32, #tpu.memory_space<vmem>>) attributes {dimension_semantics = [], scalar_prefetch = 0 : i64, scratch_operands = 0 : i64, tpu.core_type = #tpu.core_type<tc>} {
    %c0 = arith.constant 0 : index
    %c0_0 = arith.constant 0 : index
    %c0_1 = arith.constant 0 : index
    %0 = vector.load %arg0[%c0, %c0_0, %c0_1] : memref<2x2x128xf32, #tpu.memory_space<vmem>>, vector<2x1x128xf32>
    %1 = vector.shape_cast %0 : vector<2x1x128xf32> to vector<2x128xf32>
    %c0_2 = arith.constant 0 : index
    %c1 = arith.constant 1 : index
    %c0_3 = arith.constant 0 : index
    %2 = vector.load %arg0[%c0_2, %c1, %c0_3] : memref<2x2x128xf32, #tpu.memory_space<vmem>>, vector<2x1x32xf32>
    %3 = vector.shape_cast %2 : vector<2x1x32xf32> to vector<2x32xf32>
    %c0_4 = arith.constant 0 : index
    %c0_5 = arith.constant 0 : index
    %c0_6 = arith.constant 0 : index
    %4 = vector.load %arg1[%c0_4, %c0_5, %c0_6] : memref<2x16x64xf32, #tpu.memory_space<vmem>>, vector<2x16x64xf32>
    %c0_7 = arith.constant 0 : index
    %c0_8 = arith.constant 0 : index
    %5 = vector.load %arg2[%c0_7, %c0_8] : memref<128x32xf32, #tpu.memory_space<vmem>>, vector<128x32xf32>
    %cst = arith.constant dense<0.000000e+00> : vector<2x32xf32>
    %6 = tpu.matmul %1, %5, %cst {dimension_numbers = #tpu.dot_dimension_numbers<[1], [0], [0], [1], [0, 0, 1, 1], [], []>} : vector<2x128xf32>, vector<128x32xf32>, vector<2x32xf32> -> vector<2x32xf32>
    %c112 = arith.constant 112 : index
    %c0_9 = arith.constant 0 : index
    %7 = vector.load %arg3[%c112, %c0_9] : memref<120x128xf32, #tpu.memory_space<vmem>>, vector<1x32xf32>
    %8 = vector.broadcast %7 : vector<1x32xf32> to vector<2x32xf32>
    %9 = arith.addf %6, %8 : vector<2x32xf32>
    %c0_10 = arith.constant 0 : index
    %c0_11 = arith.constant 0 : index
    %10 = vector.load %arg3[%c0_10, %c0_11] : memref<120x128xf32, #tpu.memory_space<vmem>>, vector<32x96xf32>
    %cst_12 = arith.constant dense<0.000000e+00> : vector<2x96xf32>
    %11 = tpu.matmul %3, %10, %cst_12 {dimension_numbers = #tpu.dot_dimension_numbers<[1], [0], [0], [1], [0, 0, 1, 1], [], []>} : vector<2x32xf32>, vector<32x96xf32>, vector<2x96xf32> -> vector<2x96xf32>
    %c113 = arith.constant 113 : index
    %c0_13 = arith.constant 0 : index
    %12 = vector.load %arg3[%c113, %c0_13] : memref<120x128xf32, #tpu.memory_space<vmem>>, vector<1x96xf32>
    %13 = vector.broadcast %12 : vector<1x96xf32> to vector<2x96xf32>
    %14 = arith.addf %11, %13 : vector<2x96xf32>
    %c32 = arith.constant 32 : index
    %c0_14 = arith.constant 0 : index
    %15 = vector.load %arg3[%c32, %c0_14] : memref<120x128xf32, #tpu.memory_space<vmem>>, vector<32x96xf32>
    %cst_15 = arith.constant dense<0.000000e+00> : vector<2x96xf32>
    %16 = tpu.matmul %9, %15, %cst_15 {dimension_numbers = #tpu.dot_dimension_numbers<[1], [0], [0], [1], [0, 0, 1, 1], [], []>} : vector<2x32xf32>, vector<32x96xf32>, vector<2x96xf32> -> vector<2x96xf32>
    %c114 = arith.constant 114 : index
    %c0_16 = arith.constant 0 : index
    %17 = vector.load %arg3[%c114, %c0_16] : memref<120x128xf32, #tpu.memory_space<vmem>>, vector<1x96xf32>
    %18 = vector.broadcast %17 : vector<1x96xf32> to vector<2x96xf32>
    %19 = arith.addf %16, %18 : vector<2x96xf32>
    %20 = vector.extract_strided_slice %14 {offsets = [0, 0], sizes = [2, 32], strides = [1, 1]} : vector<2x96xf32> to vector<2x32xf32>
    %21 = vector.extract_strided_slice %19 {offsets = [0, 0], sizes = [2, 32], strides = [1, 1]} : vector<2x96xf32> to vector<2x32xf32>
    %22 = arith.addf %20, %21 : vector<2x32xf32>
    %23 = arith.negf %22 : vector<2x32xf32>
    %24 = math.exp %23 : vector<2x32xf32>
    %cst_17 = arith.constant 1.000000e+00 : f32
    %25 = vector.broadcast %cst_17 : f32 to vector<2x32xf32>
    %26 = arith.addf %25, %24 : vector<2x32xf32>
    %27 = arith.divf %25, %26 : vector<2x32xf32>
    %28 = vector.extract_strided_slice %14 {offsets = [0, 32], sizes = [2, 32], strides = [1, 1]} : vector<2x96xf32> to vector<2x32xf32>
    %29 = vector.extract_strided_slice %19 {offsets = [0, 32], sizes = [2, 32], strides = [1, 1]} : vector<2x96xf32> to vector<2x32xf32>
    %30 = arith.addf %28, %29 : vector<2x32xf32>
    %31 = arith.negf %30 : vector<2x32xf32>
    %32 = math.exp %31 : vector<2x32xf32>
    %cst_18 = arith.constant 1.000000e+00 : f32
    %33 = vector.broadcast %cst_18 : f32 to vector<2x32xf32>
    %34 = arith.addf %33, %32 : vector<2x32xf32>
    %35 = arith.divf %33, %34 : vector<2x32xf32>
    %36 = vector.extract_strided_slice %14 {offsets = [0, 64], sizes = [2, 32], strides = [1, 1]} : vector<2x96xf32> to vector<2x32xf32>
    %37 = vector.extract_strided_slice %19 {offsets = [0, 64], sizes = [2, 32], strides = [1, 1]} : vector<2x96xf32> to vector<2x32xf32>
    %38 = arith.mulf %27, %37 : vector<2x32xf32>
    %39 = arith.addf %36, %38 : vector<2x32xf32>
    %40 = math.tanh %39 : vector<2x32xf32>
    %cst_19 = arith.constant 1.000000e+00 : f32
    %41 = vector.broadcast %cst_19 : f32 to vector<2x32xf32>
    %42 = arith.subf %41, %35 : vector<2x32xf32>
    %43 = arith.mulf %42, %40 : vector<2x32xf32>
    %44 = arith.mulf %35, %9 : vector<2x32xf32>
    %45 = arith.addf %43, %44 : vector<2x32xf32>
    %c64 = arith.constant 64 : index
    %c0_20 = arith.constant 0 : index
    %46 = vector.load %arg3[%c64, %c0_20] : memref<120x128xf32, #tpu.memory_space<vmem>>, vector<32x64xf32>
    %cst_21 = arith.constant dense<0.000000e+00> : vector<2x64xf32>
    %47 = tpu.matmul %45, %46, %cst_21 {dimension_numbers = #tpu.dot_dimension_numbers<[1], [0], [0], [1], [0, 0, 1, 1], [], []>} : vector<2x32xf32>, vector<32x64xf32>, vector<2x64xf32> -> vector<2x64xf32>
    %48 = vector.shape_cast %47 : vector<2x64xf32> to vector<2x1x64xf32>
    %49 = vector.broadcast %48 : vector<2x1x64xf32> to vector<2x16x64xf32>
    %50 = arith.mulf %49, %4 : vector<2x16x64xf32>
    %cst_22 = arith.constant dense<0.000000e+00> : vector<2x16xf32>
    %51 = vector.multi_reduction <add>, %50, %cst_22 [2] : vector<2x16x64xf32> to vector<2x16xf32>
    %cst_23 = arith.constant dense<0xFF800000> : vector<2xf32>
    %52 = vector.multi_reduction <maximumf>, %51, %cst_23 [1] : vector<2x16xf32> to vector<2xf32>
    %53 = vector.shape_cast %52 : vector<2xf32> to vector<2x1xf32>
    %54 = vector.broadcast %53 : vector<2x1xf32> to vector<2x16xf32>
    %55 = arith.subf %51, %54 : vector<2x16xf32>
    %56 = math.exp %55 : vector<2x16xf32>
    %cst_24 = arith.constant dense<0.000000e+00> : vector<2xf32>
    %57 = vector.multi_reduction <add>, %56, %cst_24 [1] : vector<2x16xf32> to vector<2xf32>
    %58 = vector.shape_cast %57 : vector<2xf32> to vector<2x1xf32>
    %59 = vector.broadcast %58 : vector<2x1xf32> to vector<2x16xf32>
    %60 = arith.divf %56, %59 : vector<2x16xf32>
    %61 = vector.shape_cast %60 : vector<2x16xf32> to vector<2x16x1xf32>
    %62 = vector.broadcast %61 : vector<2x16x1xf32> to vector<2x16x64xf32>
    %63 = arith.mulf %62, %4 : vector<2x16x64xf32>
    %cst_25 = arith.constant dense<0.000000e+00> : vector<2x64xf32>
    %64 = vector.multi_reduction <add>, %63, %cst_25 [1] : vector<2x16x64xf32> to vector<2x64xf32>
    %c115 = arith.constant 115 : index
    %c0_26 = arith.constant 0 : index
    %65 = vector.load %arg3[%c115, %c0_26] : memref<120x128xf32, #tpu.memory_space<vmem>>, vector<1x32xf32>
    %66 = vector.broadcast %65 : vector<1x32xf32> to vector<2x32xf32>
    %67 = arith.mulf %45, %66 : vector<2x32xf32>
    %cst_27 = arith.constant dense<0.000000e+00> : vector<2xf32>
    %68 = vector.multi_reduction <add>, %67, %cst_27 [1] : vector<2x32xf32> to vector<2xf32>
    %69 = vector.shape_cast %68 : vector<2xf32> to vector<2x1xf32>
    %c116 = arith.constant 116 : index
    %c0_28 = arith.constant 0 : index
    %70 = vector.load %arg3[%c116, %c0_28] : memref<120x128xf32, #tpu.memory_space<vmem>>, vector<1x64xf32>
    %71 = vector.broadcast %70 : vector<1x64xf32> to vector<2x64xf32>
    %72 = arith.mulf %64, %71 : vector<2x64xf32>
    %cst_29 = arith.constant dense<0.000000e+00> : vector<2xf32>
    %73 = vector.multi_reduction <add>, %72, %cst_29 [1] : vector<2x64xf32> to vector<2xf32>
    %74 = vector.shape_cast %73 : vector<2xf32> to vector<2x1xf32>
    %75 = arith.addf %69, %74 : vector<2x1xf32>
    %c117 = arith.constant 117 : index
    %c0_30 = arith.constant 0 : index
    %76 = vector.load %arg3[%c117, %c0_30] : memref<120x128xf32, #tpu.memory_space<vmem>>, vector<1x32xf32>
    %77 = vector.broadcast %76 : vector<1x32xf32> to vector<2x32xf32>
    %78 = arith.mulf %3, %77 : vector<2x32xf32>
    %cst_31 = arith.constant dense<0.000000e+00> : vector<2xf32>
    %79 = vector.multi_reduction <add>, %78, %cst_31 [1] : vector<2x32xf32> to vector<2xf32>
    %80 = vector.shape_cast %79 : vector<2xf32> to vector<2x1xf32>
    %81 = arith.addf %75, %80 : vector<2x1xf32>
    %cst_32 = arith.constant 0.000000e+00 : f32
    %82 = vector.broadcast %cst_32 : f32 to vector<2x1xf32>
    %83 = arith.cmpf ogt, %81, %82 : vector<2x1xf32>
    %cst_33 = arith.constant 2.000000e-01 : f32
    %84 = vector.broadcast %cst_33 : f32 to vector<2x1xf32>
    %85 = arith.mulf %84, %81 : vector<2x1xf32>
    %86 = arith.select %83, %81, %85 : vector<2x1xi1>, vector<2x1xf32>
    %cst_34 = arith.constant 1.000000e+00 : f32
    %87 = vector.broadcast %cst_34 : f32 to vector<2x1xf32>
    %88 = arith.subf %87, %86 : vector<2x1xf32>
    %89 = vector.broadcast %88 : vector<2x1xf32> to vector<2x16xf32>
    %90 = arith.mulf %60, %89 : vector<2x16xf32>
    %91 = vector.broadcast %86 : vector<2x1xf32> to vector<2x16xf32>
    %92 = arith.addf %91, %90 : vector<2x16xf32>
    %c96 = arith.constant 96 : index
    %c0_35 = arith.constant 0 : index
    %93 = vector.load %arg3[%c96, %c0_35] : memref<120x128xf32, #tpu.memory_space<vmem>>, vector<16x128xf32>
    %cst_36 = arith.constant dense<0.000000e+00> : vector<2x128xf32>
    %94 = tpu.matmul %92, %93, %cst_36 {dimension_numbers = #tpu.dot_dimension_numbers<[1], [0], [0], [1], [0, 0, 1, 1], [], []>} : vector<2x16xf32>, vector<16x128xf32>, vector<2x128xf32> -> vector<2x128xf32>
    %c118 = arith.constant 118 : index
    %c0_37 = arith.constant 0 : index
    %95 = vector.load %arg3[%c118, %c0_37] : memref<120x128xf32, #tpu.memory_space<vmem>>, vector<1x128xf32>
    %96 = vector.broadcast %95 : vector<1x128xf32> to vector<2x128xf32>
    %97 = arith.addf %94, %96 : vector<2x128xf32>
    %c0_38 = arith.constant 0 : index
    %c0_39 = arith.constant 0 : index
    %98 = vector.load %arg4[%c0_38, %c0_39] : memref<2x128xf32, #tpu.memory_space<vmem>>, vector<2x128xf32>
    tpu.vector_store %arg4[%c0_38, %c0_39], %97 {strides = array<i32>} : memref<2x128xf32, #tpu.memory_space<vmem>>, vector<2x128xf32>,
    return
  }
}

</mosaic_0001>

<llo_original>
// kernel: decoder_forward.1
$region0: #{decoder_forward.1}
  #allocation0 [shape = 'u32[]', space=smem, size = 0x4, offset = 0x4, fixed_abs, tag = 'smem constant byte address 0x4 - core index']
  #allocation1 [shape = 'u32[72,128]{1,0:T(1,128)}', space=vmem, size = 0x9000, scoped, tag = 'internal scratch']
  %s0 = inlined_call_operand.vmem [shape: f32[2,2,128], index: 0, kind: input, shape index: {}]
  %s1 = inlined_call_operand.vmem [shape: f32[2,16,64], index: 1, kind: input, shape index: {}]
  %s2 = inlined_call_operand.vmem [shape: f32[128,32], index: 2, kind: input, shape index: {}]
  %s3 = inlined_call_operand.vmem [shape: f32[120,128], index: 3, kind: input, shape index: {}]
  %s4 = inlined_call_operand.hbm [shape: f32[2,128], index: 4, kind: output, shape index: {}]
  %s5 = sld [smem:[#allocation0]]
  $region26: #{decoder_forward.1} parent=0
    _
  %s7 = ssub.s32 1, %s5
  %s8 = scalar_select 0, %s7, %s5
  $region1: #{decoder_forward.1} parent=0
    #allocation2 [shape = 'u8[1024]{0}', space=vmem, size = 0x400, scoped, tag = 'output window, operand 0, single buffered']
    #allocation3 [shape = 's32[1]{0}', space=sflag, size = 0x4, scoped, tag = 'scoped memory for decoder_forward.1']
    %9 = vsyncpa [#allocation3], 0
    // Predicated region
    $region2: #{decoder_forward.1} parent=1 // pred_check
      _
    $region3: #{decoder_forward.1} parent=1 // pred_check_branch
      %11 = sbr.rel (0) target = $region5
    $region4: #{decoder_forward.1} parent=1 // pred_region
      _
    $region5: #{decoder_forward.1} parent=1 // pred_fallthru
      _
    // Predicated region
    $region6: #{decoder_forward.1} parent=1 // pred_check
      _
    $region7: #{decoder_forward.1} parent=1 // pred_check_branch
      %13 = sbr.rel (0) target = $region9
    $region8: #{decoder_forward.1} parent=1 // pred_region
      _
    $region9: #{decoder_forward.1} parent=1 // pred_fallthru
      _
    // Predicated region
    $region10: #{decoder_forward.1} parent=1 // pred_check
      _
    $region11: #{decoder_forward.1} parent=1 // pred_check_branch
      %15 = sbr.rel (0) target = $region13
    $region12: #{decoder_forward.1} parent=1 // pred_region
      _
    $region13: #{decoder_forward.1} parent=1 // pred_fallthru
      _
    // Predicated region
    $region14: #{decoder_forward.1} parent=1 // pred_check
      _
    $region15: #{decoder_forward.1} parent=1 // pred_check_branch
      %17 = sbr.rel (0) target = $region17
    $region16: #{decoder_forward.1} parent=1 // pred_region
      _
    $region17: #{decoder_forward.1} parent=1 // pred_fallthru
      _
    %v18 = vld [vmem:[%s0] sm:$0x1]
    %v19 = vld [vmem:[%s0 + $0x2] sm:$0x1]
    %v20 = vld [vmem:[%s0 + $0x1] sm:$0x1]
    %v21 = vld [vmem:[%s0 + $0x3] sm:$0x1]
    %v22 = vld [vmem:[%s1] sm:$0xff]
    %v23 = vld [vmem:[%s1 + $0x8] sm:$0xff]
    %v24 = vld [vmem:[%s1 + $0x10] sm:$0xff]
    %v25 = vld [vmem:[%s1 + $0x18] sm:$0xff]
    %v26 = vld [vmem:[%s2] sm:$0xff]
    %v27 = vld [vmem:[%s2 + $0x8] sm:$0xff]
    %v28 = vld [vmem:[%s2 + $0x10] sm:$0xff]
    %v29 = vld [vmem:[%s2 + $0x18] sm:$0xff]
    %v30 = vld [vmem:[%s2 + $0x20] sm:$0xff]
    %v31 = vld [vmem:[%s2 + $0x28] sm:$0xff]
    %v32 = vld [vmem:[%s2 + $0x30] sm:$0xff]
    %v33 = vld [vmem:[%s2 + $0x38] sm:$0xff]
    %v34 = vld [vmem:[%s2 + $0x40] sm:$0xff]
    %v35 = vld [vmem:[%s2 + $0x48] sm:$0xff]
    %v36 = vld [vmem:[%s2 + $0x50] sm:$0xff]
    %v37 = vld [vmem:[%s2 + $0x58] sm:$0xff]
    %v38 = vld [vmem:[%s2 + $0x60] sm:$0xff]
    %v39 = vld [vmem:[%s2 + $0x68] sm:$0xff]
    %v40 = vld [vmem:[%s2 + $0x70] sm:$0xff]
    %v41 = vld [vmem:[%s2 + $0x78] sm:$0xff]
    %v42 = vld [vmem:[%s3 + $0x70] sm:$0x1]
    %v43 = vperm.slane %v42, 0
    %v46 = vrot.slane %v19, 7
    %vm47 = vcmask 1041409
    %v48 = vsel %vm47, %v46, %v18
    %50 = vmatpush.msra.mxu0 %v41
    %51 = vmatpush.msra.mxu0 %v40
    %52 = vmatpush.msra.mxu0 %v39
    %53 = vmatpush.msra.mxu0 %v38
    %54 = vmatpush.msra.mxu0 %v37
    %55 = vmatpush.msra.mxu0 %v36
    %56 = vmatpush.msra.mxu0 %v35
    %57 = vmatpush.msra.mxu0 %v34
    %58 = vmatpush.msra.mxu0 %v33
    %59 = vmatpush.msra.mxu0 %v32
    %60 = vmatpush.msra.mxu0 %v31
    %61 = vmatpush.msra.mxu0 %v30
    %62 = vmatpush.msra.mxu0 %v29
    %63 = vmatpush.msra.mxu0 %v28
    %64 = vmatpush.msra.mxu0 %v27
    %65 = vmatpush.msra.mxu0 %v26
    %66 = vmatmul.f32.gmra.mxu0 %v48
    %v67 = vpop.f32.mrf.mxu0
    %v68 = vadd.f32 %v43, %v67
    %69 = vdwg.mxu0
    %v70 = vld [vmem:[%s3] sm:$0xff]
    %v71 = vld [vmem:[%s3 + $0x8] sm:$0xff]
    %v72 = vld [vmem:[%s3 + $0x10] sm:$0xff]
    %v73 = vld [vmem:[%s3 + $0x18] sm:$0xff]
    %v74 = vld [vmem:[%s3 + $0x71] sm:$0x1]
    %v75 = vperm.slane %v74, 0
    %v78 = vrot.slane %v21, 7
    %v79 = vsel %vm47, %v78, %v20
    %vm80 = vcmask 261120
    %v81 = vsel %vm80, %v79, 0
    %83 = vmatpush.msra.mxu0 0.0
    %84 = vmatpush.msra.mxu0 0.0
    %85 = vmatpush.msra.mxu0 0.0
    %86 = vmatpush.msra.mxu0 0.0
    %87 = vmatpush.msra.mxu0 0.0
    %88 = vmatpush.msra.mxu0 0.0
    %89 = vmatpush.msra.mxu0 0.0
    %90 = vmatpush.msra.mxu0 0.0
    %91 = vmatpush.msra.mxu0 0.0
    %92 = vmatpush.msra.mxu0 0.0
    %93 = vmatpush.msra.mxu0 0.0
    %94 = vmatpush.msra.mxu0 0.0
    %95 = vmatpush.msra.mxu0 %v73
    %96 = vmatpush.msra.mxu0 %v72
    %97 = vmatpush.msra.mxu0 %v71
    %98 = vmatpush.msra.mxu0 %v70
    %99 = vmatmul.f32.gmra.mxu0 %v81
    %v100 = vpop.f32.mrf.mxu0
    %v101 = vadd.f32 %v75, %v100
    %102 = vdwg.mxu0
    %v103 = vld [vmem:[%s3 + $0x20] sm:$0xff]
    %v104 = vld [vmem:[%s3 + $0x28] sm:$0xff]
    %v105 = vld [vmem:[%s3 + $0x30] sm:$0xff]
    %v106 = vld [vmem:[%s3 + $0x38] sm:$0xff]
    %v107 = vld [vmem:[%s3 + $0x72] sm:$0x1]
    %v108 = vperm.slane %v107, 0
    %v110 = vsel %vm80, %v68, 0
    %112 = vmatpush.msra.mxu0 0.0
    %113 = vmatpush.msra.mxu0 0.0
    %114 = vmatpush.msra.mxu0 0.0
    %115 = vmatpush.msra.mxu0 0.0
    %116 = vmatpush.msra.mxu0 0.0
    %117 = vmatpush.msra.mxu0 0.0
    %118 = vmatpush.msra.mxu0 0.0
    %119 = vmatpush.msra.mxu0 0.0
    %120 = vmatpush.msra.mxu0 0.0
    %121 = vmatpush.msra.mxu0 0.0
    %122 = vmatpush.msra.mxu0 0.0
    %123 = vmatpush.msra.mxu0 0.0
    %124 = vmatpush.msra.mxu0 %v106
    %125 = vmatpush.msra.mxu0 %v105
    %126 = vmatpush.msra.mxu0 %v104
    %127 = vmatpush.msra.mxu0 %v103
    %128 = vmatmul.f32.gmra.mxu0 %v110
    %v129 = vpop.f32.mrf.mxu0
    %v130 = vadd.f32 %v108, %v129
    %131 = vdwg.mxu0
    %v132 = vadd.f32 %v101, %v130
    %v133 = vxor.u32 %v132, 2147483648
    %v134 = vmul.f32 %v133, 1.442695
    %v135 = vpow.pop %v134
    %v136 = vadd.f32 %v135, 1.0
    %v137 = vrcp.pop %v136
    %v138 = vmul.f32 %v136, %v137
    %v139 = vsub.f32 1.0, %v138
    %v140 = vmul.f32 %v137, %v139
    %v141 = vadd.f32 %v137, %v140
    %vm142 = vweird.f32 %v136
    %vm143 = vweird.f32 %v137
    %vm144 = vmor %vm142, %vm143
    %v145 = vsel %vm144, %v137, %v141
    %v146 = vand.u32 2147483647, %v136
    %vm147 = vcmp.eq.f32.partialorder %v146, 8.507059e+37
    %v148 = vand.u32 %v136, 2147483648
    %v149 = vor.u32 1.1754944e-38, %v148
    %v150 = vsel %vm147, %v149, %v145
    %v151 = vmul.f32 1.0, %v150
    %153 = vrot.lane.b32.xlu0 %v130, 64
    %v154 = vpop.permute.xlu0 %153
    %v156 = vmul.f32 %v151, %v154
    %158 = vrot.lane.b32.xlu0 %v156, 64
    %v159 = vpop.permute.xlu0 %158
    %v161 = vadd.f32 %v101, %v159
    %v162 = vtanh.pop %v161
    %v163 = vsub.f32 1.0, %v151
    %165 = vrot.lane.b32.xlu0 %v162, 96
    %v166 = vpop.permute.xlu0 %165
    %v168 = vmul.f32 %v163, %v166
    %169 = vrot.lane.b32.xlu0 %v68, 32
    %v170 = vpop.permute.xlu0 %169
    %v172 = vmul.f32 %v151, %v170
    %v173 = vadd.f32 %v168, %v172
    %v174 = vld [vmem:[%s3 + $0x40] sm:$0xff]
    %v175 = vld [vmem:[%s3 + $0x48] sm:$0xff]
    %v176 = vld [vmem:[%s3 + $0x50] sm:$0xff]
    %v177 = vld [vmem:[%s3 + $0x58] sm:$0xff]
    %179 = vrot.lane.b32.xlu0 %v173, 96
    %v180 = vpop.permute.xlu0 %179
    %v181 = vsel %vm80, %v180, 0
    %183 = vmatpush.msra.mxu0 0.0
    %184 = vmatpush.msra.mxu0 0.0
    %185 = vmatpush.msra.mxu0 0.0
    %186 = vmatpush.msra.mxu0 0.0
    %187 = vmatpush.msra.mxu0 0.0
    %188 = vmatpush.msra.mxu0 0.0
    %189 = vmatpush.msra.mxu0 0.0
    %190 = vmatpush.msra.mxu0 0.0
    %191 = vmatpush.msra.mxu0 0.0
    %192 = vmatpush.msra.mxu0 0.0
    %193 = vmatpush.msra.mxu0 0.0
    %194 = vmatpush.msra.mxu0 0.0
    %195 = vmatpush.msra.mxu0 %v177
    %196 = vmatpush.msra.mxu0 %v176
    %197 = vmatpush.msra.mxu0 %v175
    %198 = vmatpush.msra.mxu0 %v174
    %199 = vmatmul.f32.gmra.mxu0 %v181
    %v200 = vpop.f32.mrf.mxu0
    %v201 = vadd.f32 0.0, %v200
    %202 = vdwg.mxu0
    %v204 = vrot.slane %v201, 1
    %v205 = vperm.slane %v201, 0
    %v206 = vperm.slane %v204, 0
    %v209 = vmul.f32 %v205, %v22
    %v210 = vmul.f32 %v205, %v23
    %v211 = vmul.f32 %v206, %v24
    %v212 = vmul.f32 %v206, %v25
    %vm213 = vcmask 523264
    %v214 = vsel %vm213, %v209, 0.0
    %215 = vadd.xlane.f32.xlu0 %v214
    %v216 = vpop.xlane.xlu0 %215
    %v217 = vsel %vm213, %v210, 0.0
    %218 = vadd.xlane.f32.xlu0 %v217
    %v219 = vpop.xlane.xlu0 %218
    %v220 = vsel %vm213, %v211, 0.0
    %221 = vadd.xlane.f32.xlu0 %v220
    %v222 = vpop.xlane.xlu0 %221
    %v223 = vsel %vm213, %v212, 0.0
    %224 = vadd.xlane.f32.xlu0 %v223
    %v225 = vpop.xlane.xlu0 %224
    %v230 = vlaneseq
    %v231 = vand.u32 %v230, 127
    %v232 = vperm.slane %v216, %v231
    %v233 = vadd.s32 %v231, 4294967288
    %v234 = vperm.slane %v219, %v233
    %vm235 = vcmask 130112
    %v236 = vsel %vm235, %v234, %v232
    %v237 = vperm.slane %v222, %v231
    %v238 = vperm.slane %v225, %v233
    %v239 = vsel %vm235, %v238, %v237
    %v240 = vsel %vm47, %v239, %v236
    %vm242 = vcmask 123904
    %v243 = vsel %vm242, %v240, -inf
    %244 = vmax.xlane.f32.xlu0 %v243
    %v245 = vpop.xlane.xlu0 %244
    %v247 = vperm.slane %v245, 0
    %v248 = vperm.slane %v245, 1
    %v251 = vsub.f32 %v216, %v247
    %v252 = vsub.f32 %v219, %v247
    %v253 = vsub.f32 %v222, %v248
    %v254 = vsub.f32 %v225, %v248
    %v255 = vmul.f32 %v251, 1.442695
    %v256 = vpow.pop %v255
    %v257 = vmul.f32 %v252, 1.442695
    %v258 = vpow.pop %v257
    %v259 = vmul.f32 %v253, 1.442695
    %v260 = vpow.pop %v259
    %v261 = vmul.f32 %v254, 1.442695
    %v262 = vpow.pop %v261
    %267 = vset.pattern.permute.xlu0 0
    %268 = vperm.xlu0 %267, %v256
    %v269 = vpop.permute.xlu0 %268
    %270 = vset.pattern.permute.xlu0 0
    %271 = vperm.xlu0 %270, %v258
    %v272 = vpop.permute.xlu0 %271
    %273 = vset.pattern.permute.xlu0 0
    %274 = vperm.xlu0 %273, %v260
    %v275 = vpop.permute.xlu0 %274
    %276 = vset.pattern.permute.xlu0 0
    %277 = vperm.xlu0 %276, %v262
    %v278 = vpop.permute.xlu0 %277
    %v279 = vperm.slane %v269, %v231
    %v280 = vperm.slane %v272, %v233
    %v281 = vsel %vm235, %v280, %v279
    %v282 = vperm.slane %v275, %v231
    %v283 = vperm.slane %v278, %v233
    %v284 = vsel %vm235, %v283, %v282
    %v285 = vsel %vm47, %v284, %v281
    %v287 = vsel %vm242, %v285, 0.0
    %288 = vadd.xlane.f32.xlu0 %v287
    %v289 = vpop.xlane.xlu0 %288
    %v291 = vperm.slane %v289, 0
    %v292 = vperm.slane %v289, 1
    %v295 = vrcp.pop %v291
    %v296 = vmul.f32 %v291, %v295
    %v297 = vsub.f32 1.0, %v296
    %v298 = vmul.f32 %v295, %v297
    %v299 = vadd.f32 %v295, %v298
    %vm300 = vweird.f32 %v291
    %vm301 = vweird.f32 %v295
    %vm302 = vmor %vm300, %vm301
    %v303 = vsel %vm302, %v295, %v299
    %v304 = vand.u32 2147483647, %v291
    %vm305 = vcmp.eq.f32.partialorder %v304, 8.507059e+37
    %v306 = vand.u32 %v291, 2147483648
    %v307 = vor.u32 1.1754944e-38, %v306
    %v308 = vsel %vm305, %v307, %v303
    %v309 = vmul.f32 %v256, %v308
    %v310 = vmul.f32 %v258, %v308
    %v311 = vrcp.pop %v292
    %v312 = vmul.f32 %v292, %v311
    %v313 = vsub.f32 1.0, %v312
    %v314 = vmul.f32 %v311, %v313
    %v315 = vadd.f32 %v311, %v314
    %vm316 = vweird.f32 %v292
    %vm317 = vweird.f32 %v311
    %vm318 = vmor %vm316, %vm317
    %v319 = vsel %vm318, %v311, %v315
    %v320 = vand.u32 2147483647, %v292
    %vm321 = vcmp.eq.f32.partialorder %v320, 8.507059e+37
    %v322 = vand.u32 %v292, 2147483648
    %v323 = vor.u32 1.1754944e-38, %v322
    %v324 = vsel %vm321, %v323, %v319
    %v325 = vmul.f32 %v260, %v324
    %v326 = vmul.f32 %v262, %v324
    %328 = vset.pattern.permute.xlu0 0
    %329 = vperm.xlu0 %328, %v309
    %v330 = vpop.permute.xlu0 %329
    %333 = vset.pattern.permute.xlu0 0
    %334 = vperm.xlu0 %333, %v310
    %v335 = vpop.permute.xlu0 %334
    %338 = vset.pattern.permute.xlu0 0
    %339 = vperm.xlu0 %338, %v325
    %v340 = vpop.permute.xlu0 %339
    %343 = vset.pattern.permute.xlu0 0
    %344 = vperm.xlu0 %343, %v326
    %v345 = vpop.permute.xlu0 %344
    %v347 = vmul.f32 %v330, %v22
    %v348 = vmul.f32 %v335, %v23
    %v349 = vmul.f32 %v340, %v24
    %v350 = vmul.f32 %v345, %v25
    %v351 = vsel %vm213, %v347, 0.0
    %v352 = vsel %vm213, %v348, 0.0
    %v353 = vadd.f32 %v351, %v352
    %v354 = vrot.slane %v353, 4
    %v355 = vadd.f32 %v353, %v354
    %v356 = vrot.slane %v355, 2
    %v357 = vadd.f32 %v355, %v356
    %v358 = vrot.slane %v357, 1
    %v359 = vadd.f32 %v357, %v358
    %v360 = vsel %vm213, %v349, 0.0
    %v361 = vsel %vm213, %v350, 0.0
    %v362 = vadd.f32 %v360, %v361
    %v363 = vrot.slane %v362, 4
    %v364 = vadd.f32 %v362, %v363
    %v365 = vrot.slane %v364, 2
    %v366 = vadd.f32 %v364, %v365
    %v367 = vrot.slane %v366, 1
    %v368 = vadd.f32 %v366, %v367
    %v369 = vld [vmem:[%s3 + $0x73] sm:$0x1]
    %v370 = vperm.slane %v369, 0
    %372 = vrot.lane.b32.xlu0 %v370, 32
    %v373 = vpop.permute.xlu0 %372
    %v375 = vmul.f32 %v173, %v373
    %377 = vrot.lane.b32.xlu0 %v375, 96
    %v378 = vpop.permute.xlu0 %377
    %vm380 = vcmask 254976
    %v381 = vsel %vm380, %v378, 0.0
    %382 = vadd.xlane.f32.xlu0 %v381
    %v383 = vpop.xlane.xlu0 %382
    %v384 = vld [vmem:[%s3 + $0x74] sm:$0x1]
    %v385 = vperm.slane %v384, 0
    %v386 = vmul.f32 %v359, %v385
    %v387 = vmul.f32 %v368, %v385
    %v390 = vrot.slane %v387, 7
    %v391 = vsel %vm47, %v390, %v386
    %vm393 = vcmask 517120
    %v394 = vsel %vm393, %v391, 0.0
    %395 = vadd.xlane.f32.xlu0 %v394
    %v396 = vpop.xlane.xlu0 %395
    %v397 = vadd.f32 %v383, %v396
    %v398 = vld [vmem:[%s3 + $0x75] sm:$0x1]
    %v399 = vperm.slane %v398, 0
    %v400 = vmul.f32 %v20, %v399
    %v401 = vmul.f32 %v21, %v399
    %v404 = vrot.slane %v401, 7
    %v405 = vsel %vm47, %v404, %v400
    %v407 = vsel %vm380, %v405, 0.0
    %408 = vadd.xlane.f32.xlu0 %v407
    %v409 = vpop.xlane.xlu0 %408
    %v410 = vadd.f32 %v397, %v409
    %vm411 = vcmp.gt.f32.partialorder %v410, 0.0
    %v412 = vmul.f32 %v410, 0.2
    %v413 = vsel %vm411, %v410, %v412
    %v414 = vsub.f32 1.0, %v413
    %v416 = vperm.slane %v414, 0
    %v417 = vperm.slane %v414, 1
    %v420 = vmul.f32 %v309, %v416
    %v421 = vmul.f32 %v310, %v416
    %v422 = vmul.f32 %v325, %v417
    %v423 = vmul.f32 %v326, %v417
    %428 = vset.pattern.permute.xlu0 0
    %429 = vperm.xlu0 %428, %v420
    %v430 = vpop.permute.xlu0 %429
    %431 = vset.pattern.permute.xlu0 0
    %432 = vperm.xlu0 %431, %v421
    %v433 = vpop.permute.xlu0 %432
    %434 = vset.pattern.permute.xlu0 0
    %435 = vperm.xlu0 %434, %v422
    %v436 = vpop.permute.xlu0 %435
    %437 = vset.pattern.permute.xlu0 0
    %438 = vperm.xlu0 %437, %v423
    %v439 = vpop.permute.xlu0 %438
    %v440 = vperm.slane %v430, %v231
    %v441 = vperm.slane %v433, %v233
    %v442 = vsel %vm235, %v441, %v440
    %v443 = vperm.slane %v436, %v231
    %v444 = vperm.slane %v439, %v233
    %v445 = vsel %vm235, %v444, %v443
    %v446 = vsel %vm47, %v445, %v442
    %v448 = vadd.f32 %v413, %v446
    %v449 = vld [vmem:[%s3 + $0x60] sm:$0xff]
    %v450 = vld [vmem:[%s3 + $0x68] sm:$0xff]
    %v451 = vld [vmem:[%s3 + $0x76] sm:$0x1]
    %v452 = vperm.slane %v451, 0
    %vm453 = vcmask 130048
    %v455 = vsel %vm453, %v448, 0
    %457 = vmatpush.msra.mxu0 0.0
    %458 = vmatpush.msra.mxu0 0.0
    %459 = vmatpush.msra.mxu0 0.0
    %460 = vmatpush.msra.mxu0 0.0
    %461 = vmatpush.msra.mxu0 0.0
    %462 = vmatpush.msra.mxu0 0.0
    %463 = vmatpush.msra.mxu0 0.0
    %464 = vmatpush.msra.mxu0 0.0
    %465 = vmatpush.msra.mxu0 0.0
    %466 = vmatpush.msra.mxu0 0.0
    %467 = vmatpush.msra.mxu0 0.0
    %468 = vmatpush.msra.mxu0 0.0
    %469 = vmatpush.msra.mxu0 0.0
    %470 = vmatpush.msra.mxu0 0.0
    %471 = vmatpush.msra.mxu0 %v450
    %472 = vmatpush.msra.mxu0 %v449
    %473 = vmatmul.f32.gmra.mxu0 %v455
    %v474 = vpop.f32.mrf.mxu0
    %v475 = vadd.f32 %v452, %v474
    %476 = vdwg.mxu0
    %477 = vst [vmem:[#allocation2] sm:$0x3] %v475
    // Predicated region
    $region18: #{decoder_forward.1} parent=1 // pred_check
      _
    $region19: #{decoder_forward.1} parent=1 // pred_check_branch
      %479 = sbr.rel (0) target = $region21
    $region20: #{decoder_forward.1} parent=1 // pred_region
      %481 = vsyncadd [#allocation3], 0
      %s483 = sshll.u32 [#allocation2], 4
      %s484 = int_to_ptr.vmem [resolvable:$true] %s483
      %s485 = sshll.u32 %s4, 4
      %s486 = int_to_ptr.hbm [resolvable:$true] %s485
      %488 = dma.vmem_to_hbm [thread:$0]  %s484, 32, %s486, [#allocation3]
    $region21: #{decoder_forward.1} parent=1 // pred_fallthru
      _
    // Predicated region
    $region22: #{decoder_forward.1} parent=1 // pred_check
      _
    $region23: #{decoder_forward.1} parent=1 // pred_check_branch
      %490 = sbr.rel (0) target = $region25
    $region24: #{decoder_forward.1} parent=1 // pred_region
      %492 = dma.done [#allocation3], 32
    $region25: #{decoder_forward.1} parent=1 // pred_fallthru
      _
    %493 = vsyncpa [#allocation3], 1

</llo_original>
